<compile_context>
chip_gen: v6e
topology: v6e:2x2x1
jax: 0.10.0
libtpu: 0.0.40
codegen_flags: <defaults>
</compile_context>

<pallas_src>
import jax
import jax.numpy as jnp
from jax.experimental import pallas as pl
from jax.experimental.pallas import tpu as pltpu


LANE = 128      # lane width (last-dim vector granularity)
SUBLANE = 8     # f32 sublane granularity
TM_MAX = 256    # rows per MXU pass (multiple of 128 -> also fine on v5e)


def _round_up(n, m):
    return ((n + m - 1) // m) * m


def spacegroup_policy_kernel(x_ref, w_ref, b_ref, out_ref):
    """One fused affine map per row tile: out = x @ W + b.

    x_ref  : (TM, H)    f32 backbone-input rows (cast to bf16 for the MXU)
    w_ref  : (H, Ppad)  bf16 folded weight  (Wb @ Wo, zero-padded to 256 lanes)
    b_ref  : (1, Ppad)  f32 folded bias     (bb @ Wo + bo, zero-padded)
    out_ref: (TM, Ppad) f32 logits slab; col 0 = exit/stop, cols 1..230 = spacegroup
    """
    x = x_ref[...].astype(jnp.bfloat16)
    acc = jnp.dot(x, w_ref[...], preferred_element_type=jnp.float32)
    out_ref[...] = acc + b_ref[...]      # (1, Ppad) bias broadcast over sublanes


def init_params(key, batchsize=8, hidden_dim=32, output_dim=32, prob_output=231):
    """Deterministic parameter init matching SpaceGroupPolicy.__init__ shapes."""
    k1, k2, k3, k4 = jax.random.split(key, 4)
    params = {
        # synthetic backbone projection (stands in for the injected backbone)
        "wb": (jax.random.normal(k1, (hidden_dim, output_dim), jnp.float32)
               / jnp.sqrt(hidden_dim)),
        "bb": jax.random.normal(k2, (1, output_dim), jnp.float32) * 0.01,
        # nn.Linear(output_dim, prob_output) — stored pre-transposed as (D, P)
        "wo": (jax.random.normal(k3, (output_dim, prob_output), jnp.float32)
               / jnp.sqrt(output_dim)),
        "bo": jax.random.normal(k4, (1, prob_output), jnp.float32) * 0.01,
        # PFs0 parameters (zero-initialized, as in the PyTorch module)
        "logits": jnp.zeros((batchsize, prob_output - 1), jnp.float32),
        "logits_exit": jnp.zeros((batchsize,), jnp.float32),
    }
    return params


def fold_params(params):
    """One-time prep: fold backbone-proj + outlayer into one affine map, pad lanes.

    Exact only because the stand-in backbone is linear with no activation.
    """
    wb, bb, wo, bo = params["wb"], params["bb"], params["wo"], params["bo"]
    w = wb @ wo                       # (H, P)  f32
    b = bb @ wo + bo                  # (1, P)  f32
    P = wo.shape[1]
    P_pad = _round_up(P, LANE)        # 231 -> 256: lane-dense, unmasked stores
    w = jnp.pad(w, ((0, 0), (0, P_pad - P)))
    b = jnp.pad(b, ((0, 0), (0, P_pad - P)))
    return {
        "w_folded": w.astype(jnp.bfloat16),   # halves weight DMA bytes, feeds bf16 MXU
        "b_folded": b.astype(jnp.float32),
        "prob_output": P,
    }


def _fused_affine(x, w, b):
    """out = x @ w + b over a row-tiled grid behind a single pallas_call.

    Handles any row count M (single small eval or T*B stacked evaluations):
    rows are padded up to a tile multiple and the pad is sliced off after.
    """
    M, H = x.shape
    P_pad = w.shape[1]
    tm = min(TM_MAX, _round_up(M, SUBLANE))
    m_pad = _round_up(M, tm)
    if m_pad != M:
        x = jnp.pad(x, ((0, m_pad - M), (0, 0)))
    grid = (m_pad // tm,)

    cost = pl.CostEstimate(
        flops=2 * m_pad * H * P_pad,
        transcendentals=0,
        bytes_accessed=(m_pad * H * 4          # x (f32)
                        + H * P_pad * 2        # w (bf16)
                        + P_pad * 4            # b (f32)
                        + m_pad * P_pad * 4),  # out (f32)
    )

    out = pl.pallas_call(
        spacegroup_policy_kernel,
        out_shape=jax.ShapeDtypeStruct((m_pad, P_pad), jnp.float32),
        grid_spec=pltpu.PrefetchScalarGridSpec(
            num_scalar_prefetch=0,
            grid=grid,
            in_specs=[
                # activation row tiles march down the stacked batch axis
                pl.BlockSpec((tm, H), lambda i: (i, 0)),
                # weight / bias revisit block (0,0): stay resident in VMEM
                pl.BlockSpec((H, P_pad), lambda i: (0, 0)),
                pl.BlockSpec((1, P_pad), lambda i: (0, 0)),
            ],
            out_specs=pl.BlockSpec((tm, P_pad), lambda i: (i, 0)),
        ),
        compiler_params=pltpu.CompilerParams(
            # row tiles are independent -> megacore sharding on v7x (2 TCs/chip)
            dimension_semantics=("parallel",)),
        cost_estimate=cost,
    )(x, w, b)

    return out[:M] if m_pad != M else out


def spacegroup_policy_forward(graph_feats, params, folded):
    """Mirrors SpaceGroupPolicy.forward.

    graph_feats: (M, hidden_dim) backbone-input features — M may be a single
                 batch B or T*B stacked policy evaluations — or None.
    Returns [out_stop, out_sg] with shapes (M,) and (M, prob_output - 1).
    """
    if graph_feats is None:
        # graph is None branch: return the learned logits parameters directly.
        return [params["logits_exit"], params["logits"]]

    out = _fused_affine(graph_feats, folded["w_folded"], folded["b_folded"])
    P = folded["prob_output"]
    out_stop = out[:, 0]       # exit / stop logits
    out_sg = out[:, 1:P]       # spacegroup logits (230)
    return [out_stop, out_sg]


if __name__ == "__main__":
    key = jax.random.PRNGKey(0)
    kp, kx, ks = jax.random.split(key, 3)

    batchsize, hidden_dim, output_dim, prob_output = 8, 32, 32, 231
    params = init_params(kp, batchsize, hidden_dim, output_dim, prob_output)
    folded = fold_params(params)

    # folded f32 reference weights (matched-dtype ref casts these to bf16)
    w_fold_f32 = params["wb"] @ params["wo"]
    b_fold_f32 = params["bb"] @ params["wo"] + params["bo"]

    def ref_matched(xs):
        return (jnp.dot(xs.astype(jnp.bfloat16), w_fold_f32.astype(jnp.bfloat16),
                        preferred_element_type=jnp.float32) + b_fold_f32)

    # ---- Branch 1a: single small evaluation (graph present) ----
    x = jax.random.normal(kx, (batchsize, hidden_dim), jnp.float32)
    out_stop, out_sg = spacegroup_policy_forward(x, params, folded)
    jax.block_until_ready(out_stop)
    jax.block_until_ready(out_sg)
    assert out_stop.shape == (batchsize,)
    assert out_sg.shape == (batchsize, prob_output - 1)

    r = ref_matched(x)
    assert jnp.allclose(out_stop, r[:, 0], atol=2e-3, rtol=2e-3)
    assert jnp.allclose(out_sg, r[:, 1:], atol=2e-3, rtol=2e-3)

    # Full-f32 unfolded two-GEMM reference — loose sanity check (bf16 rounding).
    h_ref = x @ params["wb"] + params["bb"]
    o_ref = h_ref @ params["wo"] + params["bo"]
    assert jnp.allclose(out_stop, o_ref[:, 0], atol=8e-2, rtol=5e-2)
    assert jnp.allclose(out_sg, o_ref[:, 1:], atol=8e-2, rtol=5e-2)

    # ---- Branch 1b: T stacked evaluations behind ONE call (amortizes launch) ----
    T = 64
    xs = jax.random.normal(ks, (T * batchsize, hidden_dim), jnp.float32)
    s_stop, s_sg = spacegroup_policy_forward(xs, params, folded)
    jax.block_until_ready(s_sg)
    assert s_stop.shape == (T * batchsize,)
    assert s_sg.shape == (T * batchsize, prob_output - 1)
    rs = ref_matched(xs)
    assert jnp.allclose(s_stop, rs[:, 0], atol=2e-3, rtol=2e-3)
    assert jnp.allclose(s_sg, rs[:, 1:], atol=2e-3, rtol=2e-3)

    # ---- Branch 2: graph is None -> parameter passthrough ----
    stop0, sg0 = spacegroup_policy_forward(None, params, folded)
    jax.block_until_ready(sg0)
    assert stop0.shape == (batchsize,)
    assert sg0.shape == (batchsize, prob_output - 1)

    print("KERNEL_OK")
</pallas_src>

<mosaic_0001>
module attributes {stable_mosaic.version = 11 : i64} {
  func.func @spacegroup_policy_kernel(%arg0: i32, %arg1: memref<8x32xf32, #tpu.memory_space<vmem>>, %arg2: memref<32x256xbf16, #tpu.memory_space<vmem>>, %arg3: memref<1x256xf32, #tpu.memory_space<vmem>>, %arg4: memref<8x256xf32, #tpu.memory_space<vmem>>) attributes {dimension_semantics = [#tpu.dimension_semantics<parallel>], iteration_bounds = array<i64: 1>, scalar_prefetch = 0 : i64, scratch_operands = 0 : i64, tpu.core_type = #tpu.core_type<tc>, window_params = [{transform_indices = @transform_0, window_bounds = array<i64: 8, 32>}, {pipeline_mode = #tpu.pipeline_mode<synchronous>, transform_indices = @transform_1, window_bounds = array<i64: 32, 256>}, {pipeline_mode = #tpu.pipeline_mode<synchronous>, transform_indices = @transform_2, window_bounds = array<i64: 1, 256>}, {transform_indices = @transform_3, window_bounds = array<i64: 8, 256>}]} {
    %c0 = arith.constant 0 : index
    %c0_0 = arith.constant 0 : index
    %0 = vector.load %arg1[%c0, %c0_0] : memref<8x32xf32, #tpu.memory_space<vmem>>, vector<8x32xf32>
    %1 = arith.truncf %0 : vector<8x32xf32> to vector<8x32xbf16>
    %c0_1 = arith.constant 0 : index
    %c0_2 = arith.constant 0 : index
    %2 = vector.load %arg2[%c0_1, %c0_2] : memref<32x256xbf16, #tpu.memory_space<vmem>>, vector<32x256xbf16>
    %cst = arith.constant dense<0.000000e+00> : vector<8x256xf32>
    %3 = tpu.matmul %1, %2, %cst {dimension_numbers = #tpu.dot_dimension_numbers<[1], [0], [0], [1], [0, 0, 1, 1], [], []>} : vector<8x32xbf16>, vector<32x256xbf16>, vector<8x256xf32> -> vector<8x256xf32>
    %c0_3 = arith.constant 0 : index
    %c0_4 = arith.constant 0 : index
    %4 = vector.load %arg3[%c0_3, %c0_4] : memref<1x256xf32, #tpu.memory_space<vmem>>, vector<1x256xf32>
    %5 = vector.broadcast %4 : vector<1x256xf32> to vector<8x256xf32>
    %6 = arith.addf %3, %5 : vector<8x256xf32>
    %c0_5 = arith.constant 0 : index
    %c0_6 = arith.constant 0 : index
    %7 = vector.load %arg4[%c0_5, %c0_6] : memref<8x256xf32, #tpu.memory_space<vmem>>, vector<8x256xf32>
    tpu.vector_store %arg4[%c0_5, %c0_6], %6 {strides = array<i32>} : memref<8x256xf32, #tpu.memory_space<vmem>>, vector<8x256xf32>,
    return
  }
  func.func @transform_0(%arg0: i32) -> (i32, i32) {
    %c0_i32 = arith.constant 0 : i32
    %c0_i32_0 = arith.constant 0 : i32
    return %arg0, %c0_i32 : i32, i32
  }
  func.func @transform_1(%arg0: i32) -> (i32, i32) {
    %c0_i32 = arith.constant 0 : i32
    %c0_i32_0 = arith.constant 0 : i32
    %c0_i32_1 = arith.constant 0 : i32
    return %c0_i32, %c0_i32_0 : i32, i32
  }
  func.func @transform_2(%arg0: i32) -> (i32, i32) {
    %c0_i32 = arith.constant 0 : i32
    %c0_i32_0 = arith.constant 0 : i32
    %c0_i32_1 = arith.constant 0 : i32
    return %c0_i32, %c0_i32_0 : i32, i32
  }
  func.func @transform_3(%arg0: i32) -> (i32, i32) {
    %c0_i32 = arith.constant 0 : i32
    %c0_i32_0 = arith.constant 0 : i32
    return %arg0, %c0_i32 : i32, i32
  }
}

</mosaic_0001>

<llo_original>
// kernel: tpu_custom_call.1
$region0: #{tpu_custom_call.1}
  #allocation0 [shape = 'u32[]', space=smem, size = 0x4, offset = 0x4, fixed_abs, tag = 'smem constant byte address 0x4 - core index']
  #allocation1 [shape = 'u32[144,128]{1,0:T(1,128)}', space=vmem, size = 0x12000, scoped, tag = 'internal scratch']
  %s0 = inlined_call_operand.hbm [shape: f32[8,32], index: 0, kind: input, shape index: {}]
  %s1 = inlined_call_operand.hbm [shape: bf16[32,256], index: 1, kind: input, shape index: {}]
  %s2 = inlined_call_operand.vmem [shape: f32[1,256], index: 2, kind: input, shape index: {}]
  %s3 = inlined_call_operand.hbm [shape: f32[8,256], index: 3, kind: output, shape index: {}]
  %s4 = sld [smem:[#allocation0]]
  $region30: #{tpu_custom_call.1} parent=0
    _
  %s6 = ssub.s32 1, %s4
  %s7 = scalar_select 0, %s6, %s4
  $region1: #{tpu_custom_call.1} parent=0
    #allocation2 [shape = 'u8[4096]{0}', space=vmem, size = 0x1000, scoped, tag = 'input window, operand 0, single buffered']
    #allocation3 [shape = 's32[1]{0}', space=sflag, size = 0x4, scoped, tag = 'scoped memory for tpu_custom_call.1']
    #allocation4 [shape = 's32[1]{0}', space=sflag, size = 0x4, scoped, tag = 'scoped memory for tpu_custom_call.1']
    #allocation5 [shape = 'u8[16384]{0}', space=vmem, size = 0x4000, scoped, tag = 'input window, operand 1, single buffered']
    #allocation6 [shape = 's32[1]{0}', space=sflag, size = 0x4, scoped, tag = 'scoped memory for tpu_custom_call.1']
    #allocation7 [shape = 'u8[8192]{0}', space=vmem, size = 0x2000, scoped, tag = 'output window, operand 0, single buffered']
    %8 = vsyncpa [#allocation3], 0
    %9 = vsyncpa [#allocation6], 0
    %10 = vsyncpa [#allocation4], 0
    // Predicated region
    $region2: #{tpu_custom_call.1} parent=1 // pred_check
      _
    $region3: #{tpu_custom_call.1} parent=1 // pred_check_branch
      %12 = sbr.rel (0) target = $region5
    $region4: #{tpu_custom_call.1} parent=1 // pred_region
      %s14 = ssub.s32 128, 128
      %15 = vsyncadd [#allocation3], %s14
      %s17 = sshll.u32 [#allocation2], 4
      %s18 = int_to_ptr.vmem [resolvable:$true] %s17
      %20 = dma.hbm_to_vmem [thread:$0]  %s0, 128, %s18, [#allocation3]
    $region5: #{tpu_custom_call.1} parent=1 // pred_fallthru
      _
    // Predicated region
    $region6: #{tpu_custom_call.1} parent=1 // pred_check
      _
    $region7: #{tpu_custom_call.1} parent=1 // pred_check_branch
      %22 = sbr.rel (0) target = $region9
    $region8: #{tpu_custom_call.1} parent=1 // pred_region
      %s24 = ssub.s32 512, 512
      %25 = vsyncadd [#allocation6], %s24
      %s26 = sshll.u32 [#allocation5], 4
      %s27 = int_to_ptr.vmem [resolvable:$true] %s26
      %32 = dma.hbm_to_vmem [thread:$0]  %s1, 512, %s27, [#allocation6], 128, 128, 8
    $region9: #{tpu_custom_call.1} parent=1 // pred_fallthru
      _
    // Predicated region
    $region10: #{tpu_custom_call.1} parent=1 // pred_check
      _
    $region11: #{tpu_custom_call.1} parent=1 // pred_check_branch
      %34 = sbr.rel (0) target = $region13
    $region12: #{tpu_custom_call.1} parent=1 // pred_region
      _
    $region13: #{tpu_custom_call.1} parent=1 // pred_fallthru
      _
    // Predicated region
    $region14: #{tpu_custom_call.1} parent=1 // pred_check
      _
    $region15: #{tpu_custom_call.1} parent=1 // pred_check_branch
      %36 = sbr.rel (0) target = $region17
    $region16: #{tpu_custom_call.1} parent=1 // pred_region
      %37 = dma.done [#allocation3], 128
    $region17: #{tpu_custom_call.1} parent=1 // pred_fallthru
      _
    // Predicated region
    $region18: #{tpu_custom_call.1} parent=1 // pred_check
      _
    $region19: #{tpu_custom_call.1} parent=1 // pred_check_branch
      %39 = sbr.rel (0) target = $region21
    $region20: #{tpu_custom_call.1} parent=1 // pred_region
      %40 = dma.done [#allocation6], 512
    $region21: #{tpu_custom_call.1} parent=1 // pred_fallthru
      _
    %v42 = vld [vmem:[#allocation2] sm:$0xff]
    %v43 = vpack.c.bf16 %v42, %v42
    %v44 = vld [vmem:[#allocation5] sm:$0xff]
    %v45 = vld [vmem:[#allocation5 + $0x8] sm:$0xff]
    %v46 = vld [vmem:[#allocation5 + $0x10] sm:$0xff]
    %v47 = vld [vmem:[#allocation5 + $0x18] sm:$0xff]
    %v48 = vld [vmem:[%s2] sm:$0x3]
    %v50 = vlaneseq
    %v51 = vshrl.u32 %v50, 7
    %v52 = vsub.s32 0, %v51
    %v53 = vrot.slane %v48, %v52
    %v54 = vlaneseq
    %v55 = vshrl.u32 %v54, 7
    %v56 = vsub.s32 1, %v55
    %v57 = vrot.slane %v48, %v56
    %v64 = vunpack.c.l.b16 %v44
    %v65 = vunpack.c.h.b16 %v44
    %v66 = vunpack.c.l.b16 %v45
    %v67 = vunpack.c.h.b16 %v45
    %v68 = vunpack.c.l.b16 %v46
    %v69 = vunpack.c.h.b16 %v46
    %v70 = vunpack.c.l.b16 %v47
    %v71 = vunpack.c.h.b16 %v47
    %v72 = vpack.c.b16 %v66, %v64
    %v73 = vpack.c.b16 %v67, %v65
    %v74 = vpack.c.b16 %v70, %v68
    %v75 = vpack.c.b16 %v71, %v69
    %vm80 = vcmask 261120
    %v82 = vsel %vm80, %v43, 0
    %84 = vmatprep.subr.bf16.mxu0 0
    %85 = vmatpush1.bf16.msra.mxu0 0
    %86 = vmatprep.subr.bf16.mxu0 0
    %87 = vmatpush1.bf16.msra.mxu0 0
    %88 = vmatprep.subr.bf16.mxu0 0
    %89 = vmatpush1.bf16.msra.mxu0 0
    %90 = vmatprep.subr.bf16.mxu0 0
    %91 = vmatpush1.bf16.msra.mxu0 0
    %92 = vmatprep.subr.bf16.mxu0 0
    %93 = vmatpush1.bf16.msra.mxu0 0
    %94 = vmatprep.subr.bf16.mxu0 0
    %95 = vmatpush1.bf16.msra.mxu0 0
    %96 = vmatprep.subr.bf16.mxu0 %v75
    %97 = vmatpush1.bf16.msra.mxu0 %v74
    %98 = vmatprep.subr.bf16.mxu0 %v73
    %99 = vmatpush1.bf16.msra.mxu0 %v72
    %100 = vmatprep.subr.bf16.mxu0 0
    %101 = vmatpush2.bf16.msra.mxu0 0
    %102 = vmatprep.subr.bf16.mxu0 0
    %103 = vmatpush2.bf16.msra.mxu0 0
    %104 = vmatprep.subr.bf16.mxu0 0
    %105 = vmatpush2.bf16.msra.mxu0 0
    %106 = vmatprep.subr.bf16.mxu0 0
    %107 = vmatpush2.bf16.msra.mxu0 0
    %108 = vmatprep.subr.bf16.mxu0 0
    %109 = vmatpush2.bf16.msra.mxu0 0
    %110 = vmatprep.subr.bf16.mxu0 0
    %111 = vmatpush2.bf16.msra.mxu0 0
    %112 = vmatprep.subr.bf16.mxu0 0
    %113 = vmatpush2.bf16.msra.mxu0 0
    %114 = vmatprep.subr.bf16.mxu0 0
    %115 = vmatpush2.bf16.msra.mxu0 0
    %116 = vmatprep.mubr.bf16.mxu0 0
    %117 = vmatmul.mubr.bf16.gmra.mxu0 %v82
    %v118 = vpop.f32.mrf.mxu0
    %v119 = vadd.f32 %v53, %v118
    %v120 = vpop.f32.mrf.mxu0
    %v121 = vadd.f32 %v57, %v120
    %v122 = vpop.f32.mrf.mxu0
    %v123 = vpop.f32.mrf.mxu0
    %124 = vdwg.mxu0
    %125 = vst [vmem:[#allocation7] sm:$0xff] %v119
    %126 = vst [vmem:[#allocation7 + $0x8] sm:$0xff] %v121
    // Predicated region
    $region22: #{tpu_custom_call.1} parent=1 // pred_check
      _
    $region23: #{tpu_custom_call.1} parent=1 // pred_check_branch
      %128 = sbr.rel (0) target = $region25
    $region24: #{tpu_custom_call.1} parent=1 // pred_region
      %s130 = ssub.s32 256, 256
      %131 = vsyncadd [#allocation4], %s130
      %s133 = sshll.u32 [#allocation7], 4
      %s134 = int_to_ptr.vmem [resolvable:$true] %s133
      %136 = dma.vmem_to_hbm [thread:$0]  %s134, 256, %s3, [#allocation4]
    $region25: #{tpu_custom_call.1} parent=1 // pred_fallthru
      _
    // Predicated region
    $region26: #{tpu_custom_call.1} parent=1 // pred_check
      _
    $region27: #{tpu_custom_call.1} parent=1 // pred_check_branch
      %138 = sbr.rel (0) target = $region29
    $region28: #{tpu_custom_call.1} parent=1 // pred_region
      %139 = dma.done [#allocation4], 256
    $region29: #{tpu_custom_call.1} parent=1 // pred_fallthru
      _
    %140 = vsyncpa [#allocation3], 1
    %141 = vsyncpa [#allocation6], 1
    %142 = vsyncpa [#allocation4], 1

</llo_original>
